<compile_context>
chip_gen: v5e
topology: v5e:2x2
jax: 0.10.0
libtpu: 0.0.40
codegen_flags: <defaults>
</compile_context>

<pallas_src>
import jax
import jax.numpy as jnp
from jax import lax
from jax.experimental import pallas as pl
from jax.experimental.pallas import tpu as pltpu


# ---------------------------------------------------------------------------
# helpers
# ---------------------------------------------------------------------------
def _round_up(x, m):
    return ((int(x) + m - 1) // m) * m


def _cdiv(a, b):
    return (int(a) + int(b) - 1) // int(b)


def _vmem_capacity_bytes():
    try:
        info = pltpu.get_tpu_info()
        return int(getattr(info, "vmem_capacity_bytes"))
    except Exception:
        return 64 * 1024 * 1024   # conservative fallback (v7x per-TC VMEM)


def _cox_row_tile(n8, vmem_cap):
    """Row tile for the Cox (tile, n_pad) f32 working block.

    Budget ~1/16 of physical VMEM for the block (≈8 MiB on v5e/v6e, ≈4 MiB on
    v7x), clamp to [8, 256] rows (multiple of 8)."""
    budget = max(2 * 1024 * 1024, min(vmem_cap // 16, 8 * 1024 * 1024))
    rows = (budget // (4 * n8)) // 8 * 8
    return int(min(256, n8, max(8, rows)))


# ---------------------------------------------------------------------------
# fused loss kernel factory
#   BCEWithLogitsLoss (mean over all elems): max(x,0) - x*z + log1p(exp(-|x|))
#   CoxLoss (Breslow-style '>=' risk set, matching the reference):
#       risk[i] = sum_j exp(theta[j]) * (time[j] >= time[i])
#       loss    = -mean((theta - log(risk)) * censor)
#   Computed with the exact log-sum-exp shift m = max(theta):
#       theta_i - log(risk_i) = theta_i - m - log(sum_j exp(theta_j - m) * R_ij)
# ---------------------------------------------------------------------------
def _make_loss_kernel(*, do_bce, do_cox, w_bce, w_cox, inv_bce, inv_cox,
                      n, n_pad, num_tiles):
    def kernel(*refs):
        it = iter(refs)
        if do_bce:
            x_ref = next(it)          # (bce_tile, 128) logits block (lane dense)
            z_ref = next(it)          # (bce_tile, 128) targets block
        if do_cox:
            th_row_ref = next(it)     # (1, n_pad) theta, resident (j axis)
            t_row_ref = next(it)      # (1, n_pad) time,  resident (j axis)
            col_ref = next(it)        # (tile, 3)  packed [time, theta, censor] (i axis)
        out_ref = next(it)            # (1, 1)
        if do_bce:
            bce_acc = next(it)        # (bce_tile, 128) f32 accumulator
        if do_cox:
            cox_acc = next(it)        # (tile, 1)  f32 accumulator
            exp_row = next(it)        # (1, n_pad) f32 hoisted exp(theta - m)
            trow32 = next(it)         # (1, n_pad) f32 hoisted time cast
            mtheta = next(it)         # (1, 1)     f32 hoisted max(theta)

        pid = pl.program_id(0)

        @pl.when(pid == 0)
        def _init():
            if do_bce:
                bce_acc[...] = jnp.zeros_like(bce_acc)
            if do_cox:
                cox_acc[...] = jnp.zeros_like(cox_acc)
                th = th_row_ref[...].astype(jnp.float32)
                j_ids = lax.broadcasted_iota(jnp.int32, (1, n_pad), 1)
                mask = j_ids < n
                m = jnp.max(jnp.where(mask, th, -jnp.inf), keepdims=True)
                mtheta[...] = m
                # padded lanes are zeroed so they never contribute to any risk set
                exp_row[...] = jnp.where(mask, jnp.exp(th - m), 0.0)
                trow32[...] = t_row_ref[...].astype(jnp.float32)

        if do_bce:
            x = x_ref[...].astype(jnp.float32)
            z = z_ref[...].astype(jnp.float32)
            # padded elements were filled with x=-40, z=0 -> ~4e-18 each (no mask needed)
            bce_acc[...] += (jnp.maximum(x, 0.0) - x * z
                             + jnp.log1p(jnp.exp(-jnp.abs(x))))

        if do_cox:
            cols = col_ref[...]                       # (tile, 3) f32
            t_i = cols[:, 0:1]                        # (tile, 1) time_i
            th_i = cols[:, 1:2]                       # (tile, 1) theta_i
            c_i = cols[:, 2:3]                        # (tile, 1) censor_i
            # fused compare+select+reduce; no (tile, n_pad) f32 R matrix materialized
            risk = jnp.sum(jnp.where(trow32[...] >= t_i, exp_row[...], 0.0),
                           axis=1, keepdims=True)     # (tile, 1), > 0 (see padding)
            # padded rows: censor padded to 0 and risk >= 1 (time_i = -3e38), so 0 exactly
            cox_acc[...] += (th_i - mtheta[...] - jnp.log(risk)) * c_i

        @pl.when(pid == num_tiles - 1)
        def _finalize():
            total = jnp.zeros((1, 1), jnp.float32)
            if do_bce:
                total = total + (w_bce * inv_bce) * jnp.sum(bce_acc[...], keepdims=True)
            if do_cox:
                total = total - (w_cox * inv_cox) * jnp.sum(cox_acc[...], keepdims=True)
            out_ref[...] = total

    return kernel


# ---------------------------------------------------------------------------
# wrapper: builds padded / re-oriented views and launches the single fused kernel
# ---------------------------------------------------------------------------
def _loss_pallas(*, pred_grade=None, grade=None, pred_hazard=None, time=None,
                 event=None, w_bce=0.0, w_cox=0.0):
    do_bce = pred_grade is not None
    do_cox = pred_hazard is not None
    if not (do_bce or do_cox):
        raise ValueError("at least one loss term required")

    vmem_cap = _vmem_capacity_bytes()

    # ---- Cox tiling --------------------------------------------------------
    if do_cox:
        n = int(time.shape[0])
        n8 = _round_up(n, 8)
        tile = _cox_row_tile(n8, vmem_cap)
        n_pad = _round_up(n8, tile)
        num_tiles = n_pad // tile
    else:
        n, n_pad, tile = 0, 0, 0
        num_tiles = None

    # ---- lane-dense BCE tiling (decoupled from the Cox row tile) -----------
    if do_bce:
        bce_elems = int(pred_grade.size)
        bce_rows = max(1, _cdiv(bce_elems, 128))
        if num_tiles is None:
            bce_tile = min(_round_up(bce_rows, 8), 512)
            num_tiles = _cdiv(bce_rows, bce_tile)
        else:
            bce_tile = _round_up(_cdiv(bce_rows, num_tiles), 8)
        bce_rows_total = num_tiles * bce_tile

    inputs, in_specs = [], []
    if do_bce:
        xf = pred_grade.reshape(-1)
        zf = grade.reshape(-1)
        pad = bce_rows_total * 128 - bce_elems
        if pad:
            # sentinel padding: per-element BCE at (x=-40, z=0) is log1p(exp(-40)) ~ 4e-18
            xf = jnp.pad(xf, (0, pad), constant_values=-40.0)
            zf = jnp.pad(zf, (0, pad), constant_values=0.0)
        inputs += [xf.reshape(bce_rows_total, 128), zf.reshape(bce_rows_total, 128)]
        in_specs += [pl.BlockSpec((bce_tile, 128), lambda i: (i, 0)),
                     pl.BlockSpec((bce_tile, 128), lambda i: (i, 0))]

    if do_cox:
        if do_bce and int(pred_grade.shape[0]) != n:
            raise ValueError("pred_grade batch must match survival batch")
        theta = pred_hazard.reshape(-1)
        t1 = time.reshape(-1)
        e1 = event.reshape(-1)
        padn = n_pad - n
        if padn:
            th_row = jnp.pad(theta, (0, padn)).reshape(1, n_pad)
            t_row = jnp.pad(t1, (0, padn)).reshape(1, n_pad)
            # i-axis columns: time pads very negative (non-empty risk set -> risk > 0),
            # theta/censor pad 0 (censor==0 makes padded rows contribute exactly 0).
            t_c = jnp.pad(t1.astype(jnp.float32), (0, padn), constant_values=-3.0e38)
            th_c = jnp.pad(theta.astype(jnp.float32), (0, padn))
            e_c = jnp.pad(e1.astype(jnp.float32), (0, padn))
        else:
            th_row = theta.reshape(1, n_pad)
            t_row = t1.reshape(1, n_pad)
            t_c = t1.astype(jnp.float32)
            th_c = theta.astype(jnp.float32)
            e_c = e1.astype(jnp.float32)
        cols = jnp.stack([t_c, th_c, e_c], axis=-1)            # (n_pad, 3)

        inputs += [th_row, t_row, cols]
        in_specs += [pl.BlockSpec((1, n_pad), lambda i: (0, 0)),   # resident theta row
                     pl.BlockSpec((1, n_pad), lambda i: (0, 0)),   # resident time row
                     pl.BlockSpec((tile, 3), lambda i: (i, 0))]    # packed i-axis slice

    scratch = []
    if do_bce:
        scratch.append(pltpu.VMEM((bce_tile, 128), jnp.float32))   # BCE lane-wide acc
    if do_cox:
        scratch += [pltpu.VMEM((tile, 1), jnp.float32),            # Cox per-row acc
                    pltpu.VMEM((1, n_pad), jnp.float32),           # hoisted exp(theta-m)
                    pltpu.VMEM((1, n_pad), jnp.float32),           # hoisted time (f32)
                    pltpu.VMEM((1, 1), jnp.float32)]               # hoisted max(theta)

    kernel = _make_loss_kernel(
        do_bce=do_bce, do_cox=do_cox,
        w_bce=float(w_bce), w_cox=float(w_cox),
        inv_bce=(1.0 / float(bce_elems)) if do_bce else 0.0,
        inv_cox=(1.0 / float(n)) if do_cox else 0.0,
        n=n, n_pad=n_pad, num_tiles=num_tiles)

    out = pl.pallas_call(
        kernel,
        out_shape=jax.ShapeDtypeStruct((1, 1), jnp.float32),
        grid=(num_tiles,),
        in_specs=in_specs,
        out_specs=pl.BlockSpec((1, 1), lambda i: (0, 0)),
        scratch_shapes=scratch,
        compiler_params=pltpu.CompilerParams(
            dimension_semantics=("arbitrary",),        # carried accumulators
            vmem_limit_bytes=int(vmem_cap // 2)),
    )(*inputs)
    return out[0, 0]


# ---------------------------------------------------------------------------
# MultiTaskLoss (same interface / semantics as the PyTorch module)
# ---------------------------------------------------------------------------
class MultiTaskLoss:
    def __init__(self, gamma=0.5):
        self.gamma = float(gamma)

    def __call__(self, task, pred_grade, pred_hazard, grade, time, event=None):
        if task == "multitask":
            return _loss_pallas(pred_grade=pred_grade, grade=grade,
                                pred_hazard=pred_hazard, time=time, event=event,
                                w_bce=self.gamma, w_cox=1.0 - self.gamma)
        elif task == "classification":
            return _loss_pallas(pred_grade=pred_grade, grade=grade, w_bce=1.0)
        elif task == "survival":
            return _loss_pallas(pred_hazard=pred_hazard, time=time, event=event,
                                w_cox=1.0)
        else:
            raise NotImplementedError(f"task method {task} is not implemented")


# ---------------------------------------------------------------------------
# Pure-JAX references (correctness check only)
# ---------------------------------------------------------------------------
def _ref_bce(pred, target):
    x = pred.astype(jnp.float32)
    z = target.astype(jnp.float32)
    return jnp.mean(jnp.maximum(x, 0.0) - x * z + jnp.log1p(jnp.exp(-jnp.abs(x))))


def _ref_cox(pred_hazard, time, event):
    n = time.shape[0]
    theta = pred_hazard.reshape(-1).astype(jnp.float32)
    t = time.astype(jnp.float32)
    r = (t.reshape(1, n) >= t.reshape(n, 1)).astype(jnp.float32)
    risk = jnp.sum(jnp.exp(theta)[None, :] * r, axis=1)
    return -jnp.mean((theta - jnp.log(risk)) * event.astype(jnp.float32))


def _ref_multitask(gamma, pg, ph, g, t, e):
    return gamma * _ref_bce(pg, g) + (1.0 - gamma) * _ref_cox(ph, t, e)


if __name__ == "__main__":
    key = jax.random.PRNGKey(0)
    k1, k2, k3, k4, k5, k6 = jax.random.split(key, 6)

    # --- small case (N=8, C=4): exercises all three task branches -----------
    N, C = 8, 4
    pred_grade = jax.random.normal(k1, (N, C), dtype=jnp.float32)
    grade = (jax.random.uniform(k2, (N, C)) > 0.5).astype(jnp.float32)
    pred_hazard = jax.random.normal(k3, (N, 1), dtype=jnp.float32)
    time = jax.random.uniform(k4, (N,), minval=0.1, maxval=5.0, dtype=jnp.float32)
    event = (jax.random.uniform(k5, (N,)) > 0.3).astype(jnp.float32)

    loss_fn = MultiTaskLoss(gamma=0.5)

    total = jax.block_until_ready(
        loss_fn("multitask", pred_grade, pred_hazard, grade, time, event))
    ref = _ref_multitask(0.5, pred_grade, pred_hazard, grade, time, event)
    assert jnp.allclose(total, ref, rtol=1e-5, atol=1e-5), (total, ref)

    cls = jax.block_until_ready(
        loss_fn("classification", pred_grade, pred_hazard, grade, time, event))
    assert jnp.allclose(cls, _ref_bce(pred_grade, grade), rtol=1e-5, atol=1e-5)

    surv = jax.block_until_ready(
        loss_fn("survival", pred_grade, pred_hazard, grade, time, event))
    assert jnp.allclose(surv, _ref_cox(pred_hazard, time, event), rtol=1e-5, atol=1e-5)

    # --- non-multiple-of-8 / multi-tile case: exercises padding, the packed
    #     column blocks, accumulator carry and the resident rows across steps ---
    N2, C2 = 300, 4
    kk = jax.random.split(k6, 5)
    pg2 = jax.random.normal(kk[0], (N2, C2), dtype=jnp.float32)
    g2 = (jax.random.uniform(kk[1], (N2, C2)) > 0.5).astype(jnp.float32)
    ph2 = jax.random.normal(kk[2], (N2, 1), dtype=jnp.float32)
    t2 = jax.random.uniform(kk[3], (N2,), minval=0.1, maxval=5.0, dtype=jnp.float32)
    e2 = (jax.random.uniform(kk[4], (N2,)) > 0.3).astype(jnp.float32)

    total2 = jax.block_until_ready(loss_fn("multitask", pg2, ph2, g2, t2, e2))
    ref2 = _ref_multitask(0.5, pg2, ph2, g2, t2, e2)
    assert jnp.allclose(total2, ref2, rtol=1e-4, atol=1e-4), (total2, ref2)

    print("KERNEL_OK")
</pallas_src>

<mosaic_0001>
module attributes {stable_mosaic.version = 11 : i64} {
  func.func @kernel(%arg0: i32, %arg1: memref<8x128xf32, #tpu.memory_space<vmem>>, %arg2: memref<8x128xf32, #tpu.memory_space<vmem>>, %arg3: memref<1x8xf32, #tpu.memory_space<vmem>>, %arg4: memref<1x8xf32, #tpu.memory_space<vmem>>, %arg5: memref<8x3xf32, #tpu.memory_space<vmem>>, %arg6: memref<1x1xf32, #tpu.memory_space<vmem>>, %arg7: memref<8x128xf32, #tpu.memory_space<vmem>>, %arg8: memref<8x1xf32, #tpu.memory_space<vmem>>, %arg9: memref<1x8xf32, #tpu.memory_space<vmem>>, %arg10: memref<1x8xf32, #tpu.memory_space<vmem>>, %arg11: memref<1x1xf32, #tpu.memory_space<vmem>>) attributes {dimension_semantics = [#tpu.dimension_semantics<arbitrary>], iteration_bounds = array<i64: 1>, scalar_prefetch = 0 : i64, scratch_operands = 5 : i64, tpu.core_type = #tpu.core_type<tc>, window_params = [{transform_indices = @transform_0, window_bounds = array<i64: 8, 128>}, {transform_indices = @transform_1, window_bounds = array<i64: 8, 128>}, {pipeline_mode = #tpu.pipeline_mode<synchronous>, transform_indices = @transform_2, window_bounds = array<i64: 1, 8>}, {pipeline_mode = #tpu.pipeline_mode<synchronous>, transform_indices = @transform_3, window_bounds = array<i64: 1, 8>}, {transform_indices = @transform_4, window_bounds = array<i64: 8, 3>}, {pipeline_mode = #tpu.pipeline_mode<synchronous>, transform_indices = @transform_5, window_bounds = array<i64: 1, 1>}]} {
    %c0_i32 = arith.constant 0 : i32
    %0 = arith.cmpi eq, %arg0, %c0_i32 : i32
    %1 = arith.extui %0 : i1 to i32
    %c0_i32_0 = arith.constant 0 : i32
    %2 = arith.cmpi ne, %1, %c0_i32_0 : i32
    scf.if %2 {
      %cst_25 = arith.constant 0.000000e+00 : f32
      %45 = vector.broadcast %cst_25 : f32 to vector<8x128xf32>
      %c0_26 = arith.constant 0 : index
      %c0_27 = arith.constant 0 : index
      %46 = vector.load %arg7[%c0_26, %c0_27] : memref<8x128xf32, #tpu.memory_space<vmem>>, vector<8x128xf32>
      tpu.vector_store %arg7[%c0_26, %c0_27], %45 {strides = array<i32>} : memref<8x128xf32, #tpu.memory_space<vmem>>, vector<8x128xf32>,
      %cst_28 = arith.constant 0.000000e+00 : f32
      %47 = vector.broadcast %cst_28 : f32 to vector<8x1xf32>
      %c0_29 = arith.constant 0 : index
      %c0_30 = arith.constant 0 : index
      %48 = vector.load %arg8[%c0_29, %c0_30] : memref<8x1xf32, #tpu.memory_space<vmem>>, vector<8x1xf32>
      tpu.vector_store %arg8[%c0_29, %c0_30], %47 {strides = array<i32>} : memref<8x1xf32, #tpu.memory_space<vmem>>, vector<8x1xf32>,
      %c0_31 = arith.constant 0 : index
      %c0_32 = arith.constant 0 : index
      %49 = vector.load %arg3[%c0_31, %c0_32] : memref<1x8xf32, #tpu.memory_space<vmem>>, vector<1x8xf32>
      %50 = tpu.iota {dimensions = array<i32: 1>} : vector<1x8xi32>
      %c8_i32 = arith.constant 8 : i32
      %51 = vector.broadcast %c8_i32 : i32 to vector<1x8xi32>
      %52 = arith.cmpi slt, %50, %51 : vector<1x8xi32>
      %cst_33 = arith.constant 0xFF800000 : f32
      %53 = vector.broadcast %cst_33 : f32 to vector<1x8xf32>
      %54 = arith.select %52, %49, %53 : vector<1x8xi1>, vector<1x8xf32>
      %55 = vector.shape_cast %54 : vector<1x8xf32> to vector<1x1x8xf32>
      %cst_34 = arith.constant dense<0xFF800000> : vector<1xf32>
      %56 = vector.multi_reduction <maximumf>, %55, %cst_34 [1, 2] : vector<1x1x8xf32> to vector<1xf32>
      %57 = vector.shape_cast %56 : vector<1xf32> to vector<1x1x1xf32>
      %58 = vector.extract %57[0, 0, 0] : f32 from vector<1x1x1xf32>
      %59 = vector.broadcast %58 : f32 to vector<1x1xf32>
      %c0_35 = arith.constant 0 : index
      %c0_36 = arith.constant 0 : index
      %60 = vector.load %arg11[%c0_35, %c0_36] : memref<1x1xf32, #tpu.memory_space<vmem>>, vector<1x1xf32>
      tpu.vector_store %arg11[%c0_35, %c0_36], %59 {strides = array<i32>} : memref<1x1xf32, #tpu.memory_space<vmem>>, vector<1x1xf32>,
      %61 = vector.broadcast %59 : vector<1x1xf32> to vector<1x8xf32>
      %62 = arith.subf %49, %61 : vector<1x8xf32>
      %63 = math.exp %62 : vector<1x8xf32>
      %cst_37 = arith.constant 0.000000e+00 : f32
      %64 = vector.broadcast %cst_37 : f32 to vector<1x8xf32>
      %65 = arith.select %52, %63, %64 : vector<1x8xi1>, vector<1x8xf32>
      %c0_38 = arith.constant 0 : index
      %c0_39 = arith.constant 0 : index
      %66 = vector.load %arg9[%c0_38, %c0_39] : memref<1x8xf32, #tpu.memory_space<vmem>>, vector<1x8xf32>
      tpu.vector_store %arg9[%c0_38, %c0_39], %65 {strides = array<i32>} : memref<1x8xf32, #tpu.memory_space<vmem>>, vector<1x8xf32>,
      %c0_40 = arith.constant 0 : index
      %c0_41 = arith.constant 0 : index
      %67 = vector.load %arg4[%c0_40, %c0_41] : memref<1x8xf32, #tpu.memory_space<vmem>>, vector<1x8xf32>
      %c0_42 = arith.constant 0 : index
      %c0_43 = arith.constant 0 : index
      %68 = vector.load %arg10[%c0_42, %c0_43] : memref<1x8xf32, #tpu.memory_space<vmem>>, vector<1x8xf32>
      tpu.vector_store %arg10[%c0_42, %c0_43], %67 {strides = array<i32>} : memref<1x8xf32, #tpu.memory_space<vmem>>, vector<1x8xf32>,
    } else {
    }
    %c0 = arith.constant 0 : index
    %c0_1 = arith.constant 0 : index
    %3 = vector.load %arg1[%c0, %c0_1] : memref<8x128xf32, #tpu.memory_space<vmem>>, vector<8x128xf32>
    %c0_2 = arith.constant 0 : index
    %c0_3 = arith.constant 0 : index
    %4 = vector.load %arg2[%c0_2, %c0_3] : memref<8x128xf32, #tpu.memory_space<vmem>>, vector<8x128xf32>
    %c0_4 = arith.constant 0 : index
    %c0_5 = arith.constant 0 : index
    %5 = vector.load %arg7[%c0_4, %c0_5] : memref<8x128xf32, #tpu.memory_space<vmem>>, vector<8x128xf32>
    %cst = arith.constant 0.000000e+00 : f32
    %6 = vector.broadcast %cst : f32 to vector<8x128xf32>
    %7 = arith.maximumf %3, %6 : vector<8x128xf32>
    %8 = arith.mulf %3, %4 : vector<8x128xf32>
    %9 = arith.subf %7, %8 : vector<8x128xf32>
    %10 = math.absf %3 : vector<8x128xf32>
    %cst_6 = arith.constant 0.000000e+00 : f32
    %11 = vector.broadcast %cst_6 : f32 to vector<8x128xf32>
    %12 = arith.subf %11, %10 : vector<8x128xf32>
    %13 = math.exp %12 : vector<8x128xf32>
    %14 = math.log1p %13 : vector<8x128xf32>
    %15 = arith.addf %9, %14 : vector<8x128xf32>
    %16 = arith.addf %5, %15 : vector<8x128xf32>
    %c0_7 = arith.constant 0 : index
    %c0_8 = arith.constant 0 : index
    %17 = vector.load %arg7[%c0_7, %c0_8] : memref<8x128xf32, #tpu.memory_space<vmem>>, vector<8x128xf32>
    tpu.vector_store %arg7[%c0_7, %c0_8], %16 {strides = array<i32>} : memref<8x128xf32, #tpu.memory_space<vmem>>, vector<8x128xf32>,
    %c0_9 = arith.constant 0 : index
    %c0_10 = arith.constant 0 : index
    %18 = vector.load %arg5[%c0_9, %c0_10] : memref<8x3xf32, #tpu.memory_space<vmem>>, vector<8x3xf32>
    %19 = vector.extract_strided_slice %18 {offsets = [0, 0], sizes = [8, 1], strides = [1, 1]} : vector<8x3xf32> to vector<8x1xf32>
    %20 = vector.extract_strided_slice %18 {offsets = [0, 1], sizes = [8, 1], strides = [1, 1]} : vector<8x3xf32> to vector<8x1xf32>
    %21 = vector.extract_strided_slice %18 {offsets = [0, 2], sizes = [8, 1], strides = [1, 1]} : vector<8x3xf32> to vector<8x1xf32>
    %c0_11 = arith.constant 0 : index
    %c0_12 = arith.constant 0 : index
    %22 = vector.load %arg10[%c0_11, %c0_12] : memref<1x8xf32, #tpu.memory_space<vmem>>, vector<1x8xf32>
    %23 = vector.broadcast %22 : vector<1x8xf32> to vector<8x8xf32>
    %24 = vector.broadcast %19 : vector<8x1xf32> to vector<8x8xf32>
    %25 = arith.cmpf oge, %23, %24 : vector<8x8xf32>
    %c0_13 = arith.constant 0 : index
    %c0_14 = arith.constant 0 : index
    %26 = vector.load %arg9[%c0_13, %c0_14] : memref<1x8xf32, #tpu.memory_space<vmem>>, vector<1x8xf32>
    %cst_15 = arith.constant 0.000000e+00 : f32
    %27 = vector.shape_cast %26 : vector<1x8xf32> to vector<1x8xf32>
    %28 = vector.broadcast %27 : vector<1x8xf32> to vector<8x8xf32>
    %29 = vector.broadcast %cst_15 : f32 to vector<8x8xf32>
    %30 = arith.select %25, %28, %29 : vector<8x8xi1>, vector<8x8xf32>
    %cst_16 = arith.constant dense<0.000000e+00> : vector<8xf32>
    %31 = vector.multi_reduction <add>, %30, %cst_16 [1] : vector<8x8xf32> to vector<8xf32>
    %32 = vector.shape_cast %31 : vector<8xf32> to vector<8x1xf32>
    %c0_17 = arith.constant 0 : index
    %c0_18 = arith.constant 0 : index
    %33 = vector.load %arg8[%c0_17, %c0_18] : memref<8x1xf32, #tpu.memory_space<vmem>>, vector<8x1xf32>
    %c0_19 = arith.constant 0 : index
    %c0_20 = arith.constant 0 : index
    %34 = vector.load %arg11[%c0_19, %c0_20] : memref<1x1xf32, #tpu.memory_space<vmem>>, vector<1x1xf32>
    %35 = vector.broadcast %34 : vector<1x1xf32> to vector<8x1xf32>
    %36 = arith.subf %20, %35 : vector<8x1xf32>
    %37 = math.log %32 : vector<8x1xf32>
    %38 = arith.subf %36, %37 : vector<8x1xf32>
    %39 = arith.mulf %38, %21 : vector<8x1xf32>
    %40 = arith.addf %33, %39 : vector<8x1xf32>
    %c0_21 = arith.constant 0 : index
    %c0_22 = arith.constant 0 : index
    %41 = vector.load %arg8[%c0_21, %c0_22] : memref<8x1xf32, #tpu.memory_space<vmem>>, vector<8x1xf32>
    tpu.vector_store %arg8[%c0_21, %c0_22], %40 {strides = array<i32>} : memref<8x1xf32, #tpu.memory_space<vmem>>, vector<8x1xf32>,
    %c0_i32_23 = arith.constant 0 : i32
    %42 = arith.cmpi eq, %arg0, %c0_i32_23 : i32
    %43 = arith.extui %42 : i1 to i32
    %c0_i32_24 = arith.constant 0 : i32
    %44 = arith.cmpi ne, %43, %c0_i32_24 : i32
    scf.if %44 {
      %cst_25 = arith.constant 0.000000e+00 : f32
      %45 = vector.broadcast %cst_25 : f32 to vector<1x1xf32>
      %c0_26 = arith.constant 0 : index
      %c0_27 = arith.constant 0 : index
      %46 = vector.load %arg7[%c0_26, %c0_27] : memref<8x128xf32, #tpu.memory_space<vmem>>, vector<8x128xf32>
      %47 = vector.shape_cast %46 : vector<8x128xf32> to vector<1x8x128xf32>
      %cst_28 = arith.constant dense<0.000000e+00> : vector<1xf32>
      %48 = vector.multi_reduction <add>, %47, %cst_28 [1, 2] : vector<1x8x128xf32> to vector<1xf32>
      %49 = vector.shape_cast %48 : vector<1xf32> to vector<1x1x1xf32>
      %50 = vector.extract %49[0, 0, 0] : f32 from vector<1x1x1xf32>
      %51 = vector.broadcast %50 : f32 to vector<1x1xf32>
      %cst_29 = arith.constant 1.562500e-02 : f32
      %52 = vector.broadcast %cst_29 : f32 to vector<1x1xf32>
      %53 = arith.mulf %52, %51 : vector<1x1xf32>
      %54 = arith.addf %45, %53 : vector<1x1xf32>
      %c0_30 = arith.constant 0 : index
      %c0_31 = arith.constant 0 : index
      %55 = vector.load %arg8[%c0_30, %c0_31] : memref<8x1xf32, #tpu.memory_space<vmem>>, vector<8x1xf32>
      %56 = vector.shape_cast %55 : vector<8x1xf32> to vector<1x8x1xf32>
      %cst_32 = arith.constant dense<0.000000e+00> : vector<1xf32>
      %57 = vector.multi_reduction <add>, %56, %cst_32 [1, 2] : vector<1x8x1xf32> to vector<1xf32>
      %58 = vector.shape_cast %57 : vector<1xf32> to vector<1x1x1xf32>
      %59 = vector.extract %58[0, 0, 0] : f32 from vector<1x1x1xf32>
      %60 = vector.broadcast %59 : f32 to vector<1x1xf32>
      %cst_33 = arith.constant 6.250000e-02 : f32
      %61 = vector.broadcast %cst_33 : f32 to vector<1x1xf32>
      %62 = arith.mulf %61, %60 : vector<1x1xf32>
      %63 = arith.subf %54, %62 : vector<1x1xf32>
      %c0_34 = arith.constant 0 : index
      %c0_35 = arith.constant 0 : index
      %64 = vector.load %arg6[%c0_34, %c0_35] : memref<1x1xf32, #tpu.memory_space<vmem>>, vector<1x1xf32>
      tpu.vector_store %arg6[%c0_34, %c0_35], %63 {strides = array<i32>} : memref<1x1xf32, #tpu.memory_space<vmem>>, vector<1x1xf32>,
    } else {
    }
    return
  }
  func.func @transform_0(%arg0: i32) -> (i32, i32) {
    %c0_i32 = arith.constant 0 : i32
    %c0_i32_0 = arith.constant 0 : i32
    return %arg0, %c0_i32 : i32, i32
  }
  func.func @transform_1(%arg0: i32) -> (i32, i32) {
    %c0_i32 = arith.constant 0 : i32
    %c0_i32_0 = arith.constant 0 : i32
    return %arg0, %c0_i32 : i32, i32
  }
  func.func @transform_2(%arg0: i32) -> (i32, i32) {
    %c0_i32 = arith.constant 0 : i32
    %c0_i32_0 = arith.constant 0 : i32
    %c0_i32_1 = arith.constant 0 : i32
    return %c0_i32, %c0_i32_0 : i32, i32
  }
  func.func @transform_3(%arg0: i32) -> (i32, i32) {
    %c0_i32 = arith.constant 0 : i32
    %c0_i32_0 = arith.constant 0 : i32
    %c0_i32_1 = arith.constant 0 : i32
    return %c0_i32, %c0_i32_0 : i32, i32
  }
  func.func @transform_4(%arg0: i32) -> (i32, i32) {
    %c0_i32 = arith.constant 0 : i32
    %c0_i32_0 = arith.constant 0 : i32
    return %arg0, %c0_i32 : i32, i32
  }
  func.func @transform_5(%arg0: i32) -> (i32, i32) {
    %c0_i32 = arith.constant 0 : i32
    %c0_i32_0 = arith.constant 0 : i32
    %c0_i32_1 = arith.constant 0 : i32
    return %c0_i32, %c0_i32_0 : i32, i32
  }
}

</mosaic_0001>

<llo_original>
// kernel: tpu_custom_call.1
$region0: #{tpu_custom_call.1}
  #allocation0 [shape = 'u32[]', space=smem, size = 0x4, offset = 0x4, fixed_abs, tag = 'smem constant byte address 0x4 - core index']
  #allocation1 [shape = 'u32[72,128]{1,0:T(1,128)}', space=vmem, size = 0x9000, scoped, tag = 'internal scratch']
  #allocation2 [shape = 'f32[8,128]{1,0:T(8,128)}', space=vmem, size = 0x1000, scoped, tag = 'scratch operand']
  #allocation3 [shape = 'f32[8,1]{1,0:T(8,128)}', space=vmem, size = 0x1000, scoped, tag = 'scratch operand']
  #allocation4 [shape = 'f32[1,8]{1,0:T(1,128)}', space=vmem, size = 0x200, scoped, tag = 'scratch operand']
  #allocation5 [shape = 'f32[1,8]{1,0:T(1,128)}', space=vmem, size = 0x200, scoped, tag = 'scratch operand']
  #allocation6 [shape = 'f32[1,1]{1,0:T(1,128)}', space=vmem, size = 0x200, scoped, tag = 'scratch operand']
  %s0 = inlined_call_operand.vmem [shape: f32[8,128], index: 0, kind: input, shape index: {}]
  %s1 = inlined_call_operand.hbm [shape: f32[8,128], index: 1, kind: input, shape index: {}]
  %s2 = inlined_call_operand.vmem [shape: f32[1,8], index: 2, kind: input, shape index: {}]
  %s3 = inlined_call_operand.vmem [shape: f32[1,8], index: 3, kind: input, shape index: {}]
  %s4 = inlined_call_operand.vmem [shape: f32[8,3], index: 4, kind: input, shape index: {}]
  %s5 = inlined_call_operand.hbm [shape: f32[1,1], index: 5, kind: output, shape index: {}]
  %s6 = sld [smem:[#allocation0]]
  $region42: #{tpu_custom_call.1} parent=0
    _
  %s8 = ssub.s32 1, %s6
  %s9 = scalar_select 0, %s8, %s6
  $region1: #{tpu_custom_call.1} parent=0
    #allocation7 [shape = 'u8[4096]{0}', space=vmem, size = 0x1000, scoped, tag = 'input window, operand 1, single buffered']
    #allocation8 [shape = 's32[1]{0}', space=sflag, size = 0x4, scoped, tag = 'scoped memory for tpu_custom_call.1']
    #allocation9 [shape = 's32[1]{0}', space=sflag, size = 0x4, scoped, tag = 'scoped memory for tpu_custom_call.1']
    #allocation10 [shape = 'u8[512]{0}', space=vmem, size = 0x400, scoped, tag = 'output window, operand 0, single buffered']
    %10 = vsyncpa [#allocation8], 0
    %11 = vsyncpa [#allocation9], 0
    // Predicated region
    $region2: #{tpu_custom_call.1} parent=1 // pred_check
      _
    $region3: #{tpu_custom_call.1} parent=1 // pred_check_branch
      %13 = sbr.rel (0) target = $region5
    $region4: #{tpu_custom_call.1} parent=1 // pred_region
      _
    $region5: #{tpu_custom_call.1} parent=1 // pred_fallthru
      _
    // Predicated region
    $region6: #{tpu_custom_call.1} parent=1 // pred_check
      _
    $region7: #{tpu_custom_call.1} parent=1 // pred_check_branch
      %15 = sbr.rel (0) target = $region9
    $region8: #{tpu_custom_call.1} parent=1 // pred_region
      %17 = vsyncadd [#allocation8], 0
      %s19 = sshll.u32 %s1, 4
      %s20 = int_to_ptr.hbm [resolvable:$true] %s19
      %s21 = sshll.u32 [#allocation7], 4
      %s22 = int_to_ptr.vmem [resolvable:$true] %s21
      %24 = dma.hbm_to_vmem [thread:$0]  %s20, 128, %s22, [#allocation8]
    $region9: #{tpu_custom_call.1} parent=1 // pred_fallthru
      _
    // Predicated region
    $region10: #{tpu_custom_call.1} parent=1 // pred_check
      _
    $region11: #{tpu_custom_call.1} parent=1 // pred_check_branch
      %26 = sbr.rel (0) target = $region13
    $region12: #{tpu_custom_call.1} parent=1 // pred_region
      _
    $region13: #{tpu_custom_call.1} parent=1 // pred_fallthru
      _
    // Predicated region
    $region14: #{tpu_custom_call.1} parent=1 // pred_check
      _
    $region15: #{tpu_custom_call.1} parent=1 // pred_check_branch
      %28 = sbr.rel (0) target = $region17
    $region16: #{tpu_custom_call.1} parent=1 // pred_region
      _
    $region17: #{tpu_custom_call.1} parent=1 // pred_fallthru
      _
    // Predicated region
    $region18: #{tpu_custom_call.1} parent=1 // pred_check
      _
    $region19: #{tpu_custom_call.1} parent=1 // pred_check_branch
      %30 = sbr.rel (0) target = $region21
    $region20: #{tpu_custom_call.1} parent=1 // pred_region
      _
    $region21: #{tpu_custom_call.1} parent=1 // pred_fallthru
      _
    // Predicated region
    $region22: #{tpu_custom_call.1} parent=1 // pred_check
      _
    $region23: #{tpu_custom_call.1} parent=1 // pred_check_branch
      %32 = sbr.rel (0) target = $region25
    $region24: #{tpu_custom_call.1} parent=1 // pred_region
      %34 = dma.done [#allocation8], 128
    $region25: #{tpu_custom_call.1} parent=1 // pred_fallthru
      _
    %p35 = scmp.eq.s32.totalorder 0, 0
    // Predicated region
    $region26: #{tpu_custom_call.1} parent=1 // pred_check
      %p36 = pneg %p35
    $region27: #{tpu_custom_call.1} parent=1 // pred_check_branch
      %38 = sbr.rel (%p36) target = $region29
    $region28: #{tpu_custom_call.1} parent=1 // pred_region
      %39 = vst [vmem:[#allocation2] sm:$0xff] 0.0
      %vm40 = vcmask 7168
      %41 = vst.msk [vmem:[#allocation3] sm:$0xff] %vm40, 0.0
      %v42 = vld [vmem:[%s2] sm:$0x1]
      %v43 = vlaneseq
      %v44 = vand.u32 %v43, 127
      %vm45 = vcmp.lt.s32.totalorder %v44, 8
      %v46 = vsel %vm45, %v42, -inf
      %vm47 = vcmask 57344
      %v48 = vsel %vm47, %v46, -inf
      %49 = vmax.xlane.f32.xlu0 %v48
      %v50 = vpop.xlane.xlu0 %49
      %v51 = vrot.slane %v50, 4
      %v52 = vmax.f32 %v50, %v51
      %v53 = vrot.slane %v52, 2
      %v54 = vmax.f32 %v52, %v53
      %v55 = vrot.slane %v54, 1
      %v56 = vmax.f32 %v54, %v55
      %s57 = vtos %v56
      %v58 = vstv %s57
      %vm59 = vcmask 0
      %60 = vst.msk [vmem:[#allocation6] sm:$0x1] %vm59, %v58
      %v61 = vsub.f32 %v42, %v58
      %v62 = vmul.f32 %v61, 1.442695
      %v63 = vpow.pop %v62
      %v64 = vsel %vm45, %v63, 0.0
      %65 = vst.msk [vmem:[#allocation4] sm:$0x1] %vm47, %v64
      %v66 = vld [vmem:[%s3] sm:$0x1]
      %67 = vst.msk [vmem:[#allocation5] sm:$0x1] %vm47, %v66
    $region29: #{tpu_custom_call.1} parent=1 // pred_fallthru
      _
    %v68 = vld [vmem:[%s0] sm:$0xff]
    %v69 = vld [vmem:[#allocation7] sm:$0xff]
    %v70 = vld [vmem:[#allocation2] sm:$0xff]
    %v71 = vmax.f32 %v68, 0.0
    %v72 = vmul.f32 %v68, %v69
    %v73 = vsub.f32 %v71, %v72
    %v74 = vand.u32 2147483647, %v68
    %v75 = vsub.f32 0.0, %v74
    %v76 = vmul.f32 %v75, 1.442695
    %v77 = vpow.pop %v76
    %v78 = vadd.f32 %v77, 1.0
    %v79 = vlog2.pop %v78
    %v80 = vmul.f32 %v79, 0.6931472
    %v81 = vmul.f32 -0.5, %v77
    %v82 = vadd.f32 %v81, 1.0
    %v83 = vmul.f32 %v82, %v77
    %v84 = vand.u32 2147483647, %v77
    %vm85 = vcmp.lt.f32.partialorder %v84, 0.0004427343
    %v86 = vsel %vm85, %v83, %v80
    %v87 = vadd.f32 %v73, %v86
    %v88 = vadd.f32 %v70, %v87
    %89 = vst [vmem:[#allocation2] sm:$0xff] %v88
    %v90 = vld [vmem:[%s4] sm:$0xff]
    %v91 = vld [vmem:[#allocation5] sm:$0x1]
    %v93 = vperm.slane %v91, 0
    %96 = vset.pattern.permute.xlu0 0
    %97 = vperm.xlu0 %96, %v90
    %v98 = vpop.permute.xlu0 %97
    %vm100 = vcmp.ge.f32.partialorder %v93, %v98
    %v101 = vld [vmem:[#allocation4] sm:$0x1]
    %v103 = vperm.slane %v101, 0
    %v105 = vsel %vm100, %v103, 0.0
    %vm106 = vcmask 64512
    %v107 = vsel %vm106, %v105, 0.0
    %108 = vadd.xlane.f32.xlu0 %v107
    %v109 = vpop.xlane.xlu0 %108
    %v110 = vld [vmem:[#allocation3] sm:$0xff]
    %v111 = vld [vmem:[#allocation6] sm:$0x1]
    %v113 = vperm.slane %v111, 0
    %114 = vrot.lane.b32.xlu0 %v113, 1
    %v115 = vpop.permute.xlu0 %114
    %v117 = vsub.f32 %v90, %v115
    %v118 = vlog2.pop %v109
    %v119 = vmul.f32 %v118, 0.6931472
    %v120 = vsub.f32 %v117, %v119
    %121 = vrot.lane.b32.xlu0 %v90, 127
    %v122 = vpop.permute.xlu0 %121
    %v124 = vmul.f32 %v120, %v122
    %126 = vrot.lane.b32.xlu0 %v124, 127
    %v127 = vpop.permute.xlu0 %126
    %v129 = vadd.f32 %v110, %v127
    %vm130 = vcmask 7168
    %131 = vst.msk [vmem:[#allocation3] sm:$0xff] %vm130, %v129
    // Predicated region
    $region30: #{tpu_custom_call.1} parent=1 // pred_check
      %p132 = pneg %p35
    $region31: #{tpu_custom_call.1} parent=1 // pred_check_branch
      %134 = sbr.rel (%p132) target = $region33
    $region32: #{tpu_custom_call.1} parent=1 // pred_region
      %v135 = vld [vmem:[#allocation2] sm:$0xff]
      %136 = vadd.xlane.f32.xlu0 %v135
      %v137 = vpop.xlane.xlu0 %136
      %v138 = vrot.slane %v137, 4
      %v139 = vadd.f32 %v137, %v138
      %v140 = vrot.slane %v139, 2
      %v141 = vadd.f32 %v139, %v140
      %v142 = vrot.slane %v141, 1
      %v143 = vadd.f32 %v141, %v142
      %s144 = vtos %v143
      %v145 = vstv %s144
      %v146 = vmul.f32 %v145, 0.015625
      %v147 = vadd.f32 %v146, 0.0
      %v148 = vld [vmem:[#allocation3] sm:$0xff]
      %v149 = vsel %vm130, %v148, 0.0
      %150 = vadd.xlane.f32.xlu0 %v149
      %v151 = vpop.xlane.xlu0 %150
      %v152 = vrot.slane %v151, 4
      %v153 = vadd.f32 %v151, %v152
      %v154 = vrot.slane %v153, 2
      %v155 = vadd.f32 %v153, %v154
      %v156 = vrot.slane %v155, 1
      %v157 = vadd.f32 %v155, %v156
      %s158 = vtos %v157
      %v159 = vstv %s158
      %v160 = vmul.f32 %v159, 0.0625
      %v161 = vsub.f32 %v147, %v160
      %vm162 = vcmask 0
      %163 = vst.msk [vmem:[#allocation10] sm:$0x1] %vm162, %v161
    $region33: #{tpu_custom_call.1} parent=1 // pred_fallthru
      _
    // Predicated region
    $region34: #{tpu_custom_call.1} parent=1 // pred_check
      _
    $region35: #{tpu_custom_call.1} parent=1 // pred_check_branch
      %165 = sbr.rel (0) target = $region37
    $region36: #{tpu_custom_call.1} parent=1 // pred_region
      %167 = vsyncadd [#allocation9], 0
      %s169 = sshll.u32 [#allocation10], 4
      %s170 = int_to_ptr.vmem [resolvable:$true] %s169
      %s171 = sshll.u32 %s5, 4
      %s172 = int_to_ptr.hbm [resolvable:$true] %s171
      %174 = dma.vmem_to_hbm [thread:$0]  %s170, 16, %s172, [#allocation9]
    $region37: #{tpu_custom_call.1} parent=1 // pred_fallthru
      _
    // Predicated region
    $region38: #{tpu_custom_call.1} parent=1 // pred_check
      _
    $region39: #{tpu_custom_call.1} parent=1 // pred_check_branch
      %176 = sbr.rel (0) target = $region41
    $region40: #{tpu_custom_call.1} parent=1 // pred_region
      %178 = dma.done [#allocation9], 16
    $region41: #{tpu_custom_call.1} parent=1 // pred_fallthru
      _
    %179 = vsyncpa [#allocation8], 1
    %180 = vsyncpa [#allocation9], 1

</llo_original>
